<compile_context>
chip_gen: v6e
topology: v6e:2x2x1
jax: 0.10.0
libtpu: 0.0.40
codegen_flags: <defaults>
</compile_context>

<pallas_src>
import jax
import jax.numpy as jnp
from jax.experimental import pallas as pl
from jax.experimental.pallas import tpu as pltpu


# ----------------------------------------------------------------------------------
# Kernel: conv3x3 (MXU, on a pre-pooled im2col slab) + folded BN/scale + Parametric
#         LIF + maxpool1 + time-sum accumulator.
#
# x_pre block per grid step s: [1, Cin*9, Tb*4*Lpad] bf16, lane axis ordered as
#   (tl time-within-block, maxpool1 parity (a,b), pixel (n, i, j) padded to Lpad)
# so one MXU matmul covers all Tb time steps, maxpool1 is a max over 4 aligned
# Lpad-wide lane chunks, and the LIF recurrence walks tl sequentially.
# ----------------------------------------------------------------------------------
def _make_snn_kernel(Tb, LF, Lpad):
    def kernel(x_ref, w_ref, bnb_ref, oma_ref, acc_ref, v_ref):
        @pl.when(pl.program_id(0) == 0)
        def _init():
            v_ref[...] = jnp.zeros_like(v_ref)        # LIF membrane, v_reset = 0
            acc_ref[...] = jnp.zeros_like(acc_ref)    # pooled-spike time-sum

        # conv3x3 with BN scale, 3/max(x) and alpha folded into w: a single MXU matmul
        # for the whole Tb-step block.  [Cp, Cin*9] @ [Cin*9, Tb*4*Lpad] -> f32.
        conv = jnp.dot(w_ref[...], x_ref[0], preferred_element_type=jnp.float32)
        bnb = bnb_ref[...]                            # [Cp, 1] bias (alpha folded in)
        oma = oma_ref[0]                              # scalar 1 - alpha

        for tl in range(Tb):                          # sequential LIF recurrence
            y = conv[:, tl * LF:(tl + 1) * LF] + bnb  # [Cp, 4*Lpad]
            v = v_ref[...] * oma + y                  # charge
            fire = v >= 1.0                           # v_threshold = 1.0
            spk = fire.astype(jnp.float32)
            v_ref[...] = jnp.where(fire, 0.0, v)      # hard reset (v_reset = 0)
            # maxpool1 (2x2/2): max over the 4 aligned parity chunks of the lane axis
            pooled = jnp.maximum(
                jnp.maximum(spk[:, 0 * Lpad:1 * Lpad], spk[:, 1 * Lpad:2 * Lpad]),
                jnp.maximum(spk[:, 2 * Lpad:3 * Lpad], spk[:, 3 * Lpad:4 * Lpad]))
            acc_ref[...] = acc_ref[...] + pooled      # sum over time

    return kernel


def snn_forward(x_pre, w_pad, bnb_pad, oma, *, Tb, LF, Lpad, vmem_limit_bytes):
    S, CT, TLF = x_pre.shape
    Cp = w_pad.shape[0]
    return pl.pallas_call(
        _make_snn_kernel(Tb, LF, Lpad),
        out_shape=jax.ShapeDtypeStruct((Cp, Lpad), jnp.float32),
        grid=(S,),
        in_specs=[
            pl.BlockSpec((1, CT, TLF), lambda s: (s, 0, 0)),      # streamed input slab
            pl.BlockSpec((Cp, CT), lambda s: (0, 0)),             # folded conv weights
            pl.BlockSpec((Cp, 1), lambda s: (0, 0)),              # folded bias
            pl.BlockSpec(memory_space=pltpu.MemorySpace.SMEM),    # (1,) scalar 1-alpha
        ],
        # Constant block index -> accumulator stays resident in VMEM, flushed once.
        out_specs=pl.BlockSpec((Cp, Lpad), lambda s: (0, 0)),
        scratch_shapes=[pltpu.VMEM((Cp, LF), jnp.float32)],       # LIF membrane v
        compiler_params=pltpu.CompilerParams(
            dimension_semantics=("arbitrary",),                    # sequential in time
            vmem_limit_bytes=vmem_limit_bytes),
    )(x_pre, w_pad, bnb_pad, oma)


# ----------------------------------------------------------------------------------
# VMEM-budget-driven time blocking
# ----------------------------------------------------------------------------------
def _vmem_capacity_bytes():
    try:
        return int(pltpu.get_tpu_info().vmem_capacity_bytes)
    except Exception:
        return 64 * 1024 * 1024   # conservative fallback (v7x per-TC capacity)


def _plan_time_blocking(T, CT, LF, Cp, Lpad):
    """Pick Tb (time steps folded into each grid block) + vmem limit from the budget."""
    vmem_cap = _vmem_capacity_bytes()
    budget = int(vmem_cap * 0.6)
    fixed = Cp * LF * 4 + Cp * Lpad * 4 + 4 * Cp * LF * 4   # v, acc, elementwise temps
    tb = 1
    for cand in range(1, min(T, 8) + 1):
        if T % cand:
            continue
        stream = 2 * cand * CT * LF * 2      # double-buffered bf16 input block
        convbuf = Cp * cand * LF * 4         # f32 conv result for the whole block
        if stream + convbuf + fixed <= budget:
            tb = cand
    need = 2 * tb * CT * LF * 2 + Cp * tb * LF * 4 + fixed
    vmem_limit = min(max(need + (8 << 20), 32 << 20), int(vmem_cap))
    return tb, vmem_limit


# ----------------------------------------------------------------------------------
# Full forward (glue: layout prep + parameter folding + tiny classifier)
# ----------------------------------------------------------------------------------
def resnetn_forward(x, params):
    # x: [N, T, Cin, H, W] float32 (PyTorch layout before the in-forward permute)
    N, T, Cin, H, W = x.shape
    assert H % 4 == 0 and W % 4 == 0, "need H, W divisible by 4 (two 2x2 pools)"
    x = x.astype(jnp.float32)

    Cout = params["conv_w"].shape[0]
    K = params["fc_w"].shape[0]

    H2, W2 = H // 2, W // 2                  # after maxpool0
    Hc, Wc = H2 - 2, W2 - 2                  # after conv3x3 (valid, no bias)
    Hp, Wp = Hc // 2, Wc // 2                # after maxpool1
    PHW = Hp * Wp
    NP = N * PHW
    Lpad = ((NP + 127) // 128) * 128         # pad per-parity pixel axis to lane multiple
    CT = Cin * 9
    LF = 4 * Lpad
    Cp = ((Cout + 7) // 8) * 8               # pad channels to full 8-sublane vregs

    Tb, vmem_limit = _plan_time_blocking(T, CT, LF, Cp, Lpad)

    # Global max for 3*x/max(x); the (positive) scale is folded into the conv weights
    # below, so it commutes with maxpool0.  jnp.max fuses into the layout-prep pass.
    max_val = jnp.max(x)

    # ---- layout prep (pure XLA glue) ------------------------------------------------
    # H = 2*mh + u, W = 2*mw + v (maxpool0 windows); conv output h = 2*i + a,
    # w = 2*j + b (maxpool1 parities); tap = (dy, dx); pixel lane = n*PHW + i*Wp + j.
    xt = jnp.transpose(x, (1, 2, 0, 3, 4))                       # [T, Cin, N, H, W]
    xp = xt.reshape(T, Cin, N, H2, 2, W2, 2).max(axis=(4, 6))    # maxpool0 in wrapper
    xp = xp.astype(jnp.bfloat16)                                 # stream as bf16
    wins = [xp[..., dy:dy + Hc, dx:dx + Wc]
            for dy in range(3) for dx in range(3)]               # 9 conv taps
    xw = jnp.stack(wins, axis=2)                                 # [T, Cin, 9, N, Hc, Wc]
    xw = xw.reshape(T, Cin, 9, N, Hp, 2, Wp, 2)                  # t ci tap n i a j b
    xw = jnp.transpose(xw, (0, 1, 2, 5, 7, 3, 4, 6))             # t ci tap a b n i j
    xw = xw.reshape(T, CT, 4, NP)
    xw = jnp.pad(xw, ((0, 0), (0, 0), (0, 0), (0, Lpad - NP)))
    xw = xw.reshape(T, CT, LF)
    # fold Tb consecutive time steps into the lane axis of each grid block
    x_pre = (xw.reshape(T // Tb, Tb, CT, LF)
               .transpose(0, 2, 1, 3)
               .reshape(T // Tb, CT, Tb * LF))

    # ---- parameter folding (glue) ---------------------------------------------------
    eps = 1e-5
    bn_s = params["bn_gamma"] / jnp.sqrt(params["bn_var"] + eps)           # [Cout]
    alpha = jax.nn.sigmoid(params["lif_w"])                                # 1/tau
    w_eff = (params["conv_w"].reshape(Cout, CT)
             * (alpha * bn_s * 3.0 / max_val)[:, None])                    # [Cout, CT]
    bnb_eff = alpha * (params["bn_beta"] - params["bn_mean"] * bn_s)       # [Cout]
    w_pad = jnp.zeros((Cp, CT), jnp.float32).at[:Cout].set(w_eff).astype(jnp.bfloat16)
    bnb_pad = jnp.zeros((Cp, 1), jnp.float32).at[:Cout, 0].set(bnb_eff)
    oma = jnp.reshape(1.0 - alpha, (1,)).astype(jnp.float32)

    # ---- main kernel: conv + BN + LIF + maxpool1 + time-sum -------------------------
    acc = snn_forward(x_pre, w_pad, bnb_pad, oma,
                      Tb=Tb, LF=LF, Lpad=Lpad, vmem_limit_bytes=vmem_limit)

    # ---- classifier (time-mean + Linear, tiny) --------------------------------------
    # Padded channels / lanes are sliced off here, so any spikes in the pad region
    # (where y = bnb) never reach the logits.
    acc = acc[:Cout, :NP].reshape(Cout, N, PHW)
    fcw = params["fc_w"].reshape(K, Cout, PHW).astype(jnp.float32)
    logits = jnp.einsum("cnp,kcp->nk", acc, fcw) / float(T)
    return logits


if __name__ == "__main__":
    key = jax.random.PRNGKey(0)
    k_x, k_conv, k_g, k_b, k_m, k_v, k_fc = jax.random.split(key, 7)

    # Small shapes consistent with the module: DVS-like 2-channel frames.
    N, T, Cin, H, W = 2, 4, 2, 32, 32
    x = jax.random.uniform(k_x, (N, T, Cin, H, W), dtype=jnp.float32)

    Cout = 6
    Hp, Wp = (H // 2 - 2) // 2, (W // 2 - 2) // 2     # maxpool0 -> conv(3x3) -> maxpool1
    F = Cout * Hp * Wp                                # analogue of the module's out_features
    num_classes = 11

    params = {
        "conv_w": 0.3 * jax.random.normal(k_conv, (Cout, Cin, 3, 3), jnp.float32),
        "bn_gamma": 1.0 + 0.1 * jax.random.normal(k_g, (Cout,), jnp.float32),
        "bn_beta": 0.1 * jax.random.normal(k_b, (Cout,), jnp.float32),
        "bn_mean": 0.1 * jax.random.normal(k_m, (Cout,), jnp.float32),
        "bn_var": jnp.abs(jax.random.normal(k_v, (Cout,), jnp.float32)) + 0.5,
        "lif_w": jnp.array(0.0, dtype=jnp.float32),   # init_tau=2.0 -> sigmoid(w)=0.5
        "fc_w": 0.05 * jax.random.normal(k_fc, (num_classes, F), jnp.float32),
    }

    out = jax.jit(resnetn_forward)(x, params)
    out = jax.block_until_ready(out)
    assert out.shape == (N, num_classes) and out.dtype == jnp.float32
    print("KERNEL_OK")
</pallas_src>

<mosaic_0001>
module attributes {stable_mosaic.version = 11 : i64} {
  func.func @kernel(%arg0: i32, %arg1: memref<1x18x2048xbf16, #tpu.memory_space<vmem>>, %arg2: memref<8x18xbf16, #tpu.memory_space<vmem>>, %arg3: memref<8x1xf32, #tpu.memory_space<vmem>>, %arg4: memref<1xf32, #tpu.memory_space<smem>>, %arg5: memref<8x128xf32, #tpu.memory_space<vmem>>, %arg6: memref<8x512xf32, #tpu.memory_space<vmem>>) attributes {dimension_semantics = [#tpu.dimension_semantics<arbitrary>], iteration_bounds = array<i64: 1>, scalar_prefetch = 0 : i64, scratch_operands = 1 : i64, tpu.core_type = #tpu.core_type<tc>, window_params = [{transform_indices = @transform_0, window_bounds = array<i64: 1, 18, 2048>}, {pipeline_mode = #tpu.pipeline_mode<synchronous>, transform_indices = @transform_1, window_bounds = array<i64: 8, 18>}, {pipeline_mode = #tpu.pipeline_mode<synchronous>, transform_indices = @transform_2, window_bounds = array<i64: 8, 1>}, {transform_indices = @transform_3, window_bounds = array<i64: 1>}, {pipeline_mode = #tpu.pipeline_mode<synchronous>, transform_indices = @transform_4, window_bounds = array<i64: 8, 128>}]} {
    %c0_i32 = arith.constant 0 : i32
    %0 = arith.cmpi eq, %arg0, %c0_i32 : i32
    %1 = arith.extui %0 : i1 to i32
    %c0_i32_0 = arith.constant 0 : i32
    %2 = arith.cmpi ne, %1, %c0_i32_0 : i32
    scf.if %2 {
      %cst_48 = arith.constant 0.000000e+00 : f32
      %105 = vector.broadcast %cst_48 : f32 to vector<8x512xf32>
      %c0_49 = arith.constant 0 : index
      %c0_50 = arith.constant 0 : index
      %106 = vector.load %arg6[%c0_49, %c0_50] : memref<8x512xf32, #tpu.memory_space<vmem>>, vector<8x512xf32>
      tpu.vector_store %arg6[%c0_49, %c0_50], %105 {strides = array<i32>} : memref<8x512xf32, #tpu.memory_space<vmem>>, vector<8x512xf32>,
      %cst_51 = arith.constant 0.000000e+00 : f32
      %107 = vector.broadcast %cst_51 : f32 to vector<8x128xf32>
      %c0_52 = arith.constant 0 : index
      %c0_53 = arith.constant 0 : index
      %108 = vector.load %arg5[%c0_52, %c0_53] : memref<8x128xf32, #tpu.memory_space<vmem>>, vector<8x128xf32>
      tpu.vector_store %arg5[%c0_52, %c0_53], %107 {strides = array<i32>} : memref<8x128xf32, #tpu.memory_space<vmem>>, vector<8x128xf32>,
    } else {
    }
    %c0 = arith.constant 0 : index
    %c0_1 = arith.constant 0 : index
    %3 = vector.load %arg2[%c0, %c0_1] : memref<8x18xbf16, #tpu.memory_space<vmem>>, vector<8x18xbf16>
    %c0_2 = arith.constant 0 : index
    %c0_3 = arith.constant 0 : index
    %c0_4 = arith.constant 0 : index
    %4 = vector.load %arg1[%c0_2, %c0_3, %c0_4] : memref<1x18x2048xbf16, #tpu.memory_space<vmem>>, vector<1x18x2048xbf16>
    %5 = vector.shape_cast %4 : vector<1x18x2048xbf16> to vector<18x2048xbf16>
    %cst = arith.constant dense<0.000000e+00> : vector<8x2048xf32>
    %6 = tpu.matmul %3, %5, %cst {dimension_numbers = #tpu.dot_dimension_numbers<[1], [0], [0], [1], [0, 0, 1, 1], [], []>} : vector<8x18xbf16>, vector<18x2048xbf16>, vector<8x2048xf32> -> vector<8x2048xf32>
    %c0_5 = arith.constant 0 : index
    %c0_6 = arith.constant 0 : index
    %7 = vector.load %arg3[%c0_5, %c0_6] : memref<8x1xf32, #tpu.memory_space<vmem>>, vector<8x1xf32>
    %c0_7 = arith.constant 0 : index
    %8 = memref.load %arg4[%c0_7] : memref<1xf32, #tpu.memory_space<smem>>
    %9 = vector.extract_strided_slice %6 {offsets = [0, 0], sizes = [8, 512], strides = [1, 1]} : vector<8x2048xf32> to vector<8x512xf32>
    %10 = vector.broadcast %7 : vector<8x1xf32> to vector<8x512xf32>
    %11 = arith.addf %9, %10 : vector<8x512xf32>
    %c0_8 = arith.constant 0 : index
    %c0_9 = arith.constant 0 : index
    %12 = vector.load %arg6[%c0_8, %c0_9] : memref<8x512xf32, #tpu.memory_space<vmem>>, vector<8x512xf32>
    %13 = vector.broadcast %8 : f32 to vector<8x512xf32>
    %14 = arith.mulf %12, %13 : vector<8x512xf32>
    %15 = arith.addf %14, %11 : vector<8x512xf32>
    %cst_10 = arith.constant 1.000000e+00 : f32
    %16 = vector.broadcast %cst_10 : f32 to vector<8x512xf32>
    %17 = arith.cmpf oge, %15, %16 : vector<8x512xf32>
    %18 = arith.extui %17 : vector<8x512xi1> to vector<8x512xi32>
    %19 = arith.sitofp %18 : vector<8x512xi32> to vector<8x512xf32>
    %cst_11 = arith.constant 0.000000e+00 : f32
    %20 = vector.broadcast %cst_11 : f32 to vector<8x512xf32>
    %21 = arith.select %17, %20, %15 : vector<8x512xi1>, vector<8x512xf32>
    %c0_12 = arith.constant 0 : index
    %c0_13 = arith.constant 0 : index
    %22 = vector.load %arg6[%c0_12, %c0_13] : memref<8x512xf32, #tpu.memory_space<vmem>>, vector<8x512xf32>
    tpu.vector_store %arg6[%c0_12, %c0_13], %21 {strides = array<i32>} : memref<8x512xf32, #tpu.memory_space<vmem>>, vector<8x512xf32>,
    %23 = vector.extract_strided_slice %19 {offsets = [0, 0], sizes = [8, 128], strides = [1, 1]} : vector<8x512xf32> to vector<8x128xf32>
    %24 = vector.extract_strided_slice %19 {offsets = [0, 128], sizes = [8, 128], strides = [1, 1]} : vector<8x512xf32> to vector<8x128xf32>
    %25 = arith.maximumf %23, %24 : vector<8x128xf32>
    %26 = vector.extract_strided_slice %19 {offsets = [0, 256], sizes = [8, 128], strides = [1, 1]} : vector<8x512xf32> to vector<8x128xf32>
    %27 = vector.extract_strided_slice %19 {offsets = [0, 384], sizes = [8, 128], strides = [1, 1]} : vector<8x512xf32> to vector<8x128xf32>
    %28 = arith.maximumf %26, %27 : vector<8x128xf32>
    %29 = arith.maximumf %25, %28 : vector<8x128xf32>
    %c0_14 = arith.constant 0 : index
    %c0_15 = arith.constant 0 : index
    %30 = vector.load %arg5[%c0_14, %c0_15] : memref<8x128xf32, #tpu.memory_space<vmem>>, vector<8x128xf32>
    %31 = arith.addf %30, %29 : vector<8x128xf32>
    %c0_16 = arith.constant 0 : index
    %c0_17 = arith.constant 0 : index
    %32 = vector.load %arg5[%c0_16, %c0_17] : memref<8x128xf32, #tpu.memory_space<vmem>>, vector<8x128xf32>
    tpu.vector_store %arg5[%c0_16, %c0_17], %31 {strides = array<i32>} : memref<8x128xf32, #tpu.memory_space<vmem>>, vector<8x128xf32>,
    %33 = vector.extract_strided_slice %6 {offsets = [0, 512], sizes = [8, 512], strides = [1, 1]} : vector<8x2048xf32> to vector<8x512xf32>
    %34 = vector.broadcast %7 : vector<8x1xf32> to vector<8x512xf32>
    %35 = arith.addf %33, %34 : vector<8x512xf32>
    %c0_18 = arith.constant 0 : index
    %c0_19 = arith.constant 0 : index
    %36 = vector.load %arg6[%c0_18, %c0_19] : memref<8x512xf32, #tpu.memory_space<vmem>>, vector<8x512xf32>
    %37 = vector.broadcast %8 : f32 to vector<8x512xf32>
    %38 = arith.mulf %36, %37 : vector<8x512xf32>
    %39 = arith.addf %38, %35 : vector<8x512xf32>
    %cst_20 = arith.constant 1.000000e+00 : f32
    %40 = vector.broadcast %cst_20 : f32 to vector<8x512xf32>
    %41 = arith.cmpf oge, %39, %40 : vector<8x512xf32>
    %42 = arith.extui %41 : vector<8x512xi1> to vector<8x512xi32>
    %43 = arith.sitofp %42 : vector<8x512xi32> to vector<8x512xf32>
    %cst_21 = arith.constant 0.000000e+00 : f32
    %44 = vector.broadcast %cst_21 : f32 to vector<8x512xf32>
    %45 = arith.select %41, %44, %39 : vector<8x512xi1>, vector<8x512xf32>
    %c0_22 = arith.constant 0 : index
    %c0_23 = arith.constant 0 : index
    %46 = vector.load %arg6[%c0_22, %c0_23] : memref<8x512xf32, #tpu.memory_space<vmem>>, vector<8x512xf32>
    tpu.vector_store %arg6[%c0_22, %c0_23], %45 {strides = array<i32>} : memref<8x512xf32, #tpu.memory_space<vmem>>, vector<8x512xf32>,
    %47 = vector.extract_strided_slice %43 {offsets = [0, 0], sizes = [8, 128], strides = [1, 1]} : vector<8x512xf32> to vector<8x128xf32>
    %48 = vector.extract_strided_slice %43 {offsets = [0, 128], sizes = [8, 128], strides = [1, 1]} : vector<8x512xf32> to vector<8x128xf32>
    %49 = arith.maximumf %47, %48 : vector<8x128xf32>
    %50 = vector.extract_strided_slice %43 {offsets = [0, 256], sizes = [8, 128], strides = [1, 1]} : vector<8x512xf32> to vector<8x128xf32>
    %51 = vector.extract_strided_slice %43 {offsets = [0, 384], sizes = [8, 128], strides = [1, 1]} : vector<8x512xf32> to vector<8x128xf32>
    %52 = arith.maximumf %50, %51 : vector<8x128xf32>
    %53 = arith.maximumf %49, %52 : vector<8x128xf32>
    %c0_24 = arith.constant 0 : index
    %c0_25 = arith.constant 0 : index
    %54 = vector.load %arg5[%c0_24, %c0_25] : memref<8x128xf32, #tpu.memory_space<vmem>>, vector<8x128xf32>
    %55 = arith.addf %54, %53 : vector<8x128xf32>
    %c0_26 = arith.constant 0 : index
    %c0_27 = arith.constant 0 : index
    %56 = vector.load %arg5[%c0_26, %c0_27] : memref<8x128xf32, #tpu.memory_space<vmem>>, vector<8x128xf32>
    tpu.vector_store %arg5[%c0_26, %c0_27], %55 {strides = array<i32>} : memref<8x128xf32, #tpu.memory_space<vmem>>, vector<8x128xf32>,
    %57 = vector.extract_strided_slice %6 {offsets = [0, 1024], sizes = [8, 512], strides = [1, 1]} : vector<8x2048xf32> to vector<8x512xf32>
    %58 = vector.broadcast %7 : vector<8x1xf32> to vector<8x512xf32>
    %59 = arith.addf %57, %58 : vector<8x512xf32>
    %c0_28 = arith.constant 0 : index
    %c0_29 = arith.constant 0 : index
    %60 = vector.load %arg6[%c0_28, %c0_29] : memref<8x512xf32, #tpu.memory_space<vmem>>, vector<8x512xf32>
    %61 = vector.broadcast %8 : f32 to vector<8x512xf32>
    %62 = arith.mulf %60, %61 : vector<8x512xf32>
    %63 = arith.addf %62, %59 : vector<8x512xf32>
    %cst_30 = arith.constant 1.000000e+00 : f32
    %64 = vector.broadcast %cst_30 : f32 to vector<8x512xf32>
    %65 = arith.cmpf oge, %63, %64 : vector<8x512xf32>
    %66 = arith.extui %65 : vector<8x512xi1> to vector<8x512xi32>
    %67 = arith.sitofp %66 : vector<8x512xi32> to vector<8x512xf32>
    %cst_31 = arith.constant 0.000000e+00 : f32
    %68 = vector.broadcast %cst_31 : f32 to vector<8x512xf32>
    %69 = arith.select %65, %68, %63 : vector<8x512xi1>, vector<8x512xf32>
    %c0_32 = arith.constant 0 : index
    %c0_33 = arith.constant 0 : index
    %70 = vector.load %arg6[%c0_32, %c0_33] : memref<8x512xf32, #tpu.memory_space<vmem>>, vector<8x512xf32>
    tpu.vector_store %arg6[%c0_32, %c0_33], %69 {strides = array<i32>} : memref<8x512xf32, #tpu.memory_space<vmem>>, vector<8x512xf32>,
    %71 = vector.extract_strided_slice %67 {offsets = [0, 0], sizes = [8, 128], strides = [1, 1]} : vector<8x512xf32> to vector<8x128xf32>
    %72 = vector.extract_strided_slice %67 {offsets = [0, 128], sizes = [8, 128], strides = [1, 1]} : vector<8x512xf32> to vector<8x128xf32>
    %73 = arith.maximumf %71, %72 : vector<8x128xf32>
    %74 = vector.extract_strided_slice %67 {offsets = [0, 256], sizes = [8, 128], strides = [1, 1]} : vector<8x512xf32> to vector<8x128xf32>
    %75 = vector.extract_strided_slice %67 {offsets = [0, 384], sizes = [8, 128], strides = [1, 1]} : vector<8x512xf32> to vector<8x128xf32>
    %76 = arith.maximumf %74, %75 : vector<8x128xf32>
    %77 = arith.maximumf %73, %76 : vector<8x128xf32>
    %c0_34 = arith.constant 0 : index
    %c0_35 = arith.constant 0 : index
    %78 = vector.load %arg5[%c0_34, %c0_35] : memref<8x128xf32, #tpu.memory_space<vmem>>, vector<8x128xf32>
    %79 = arith.addf %78, %77 : vector<8x128xf32>
    %c0_36 = arith.constant 0 : index
    %c0_37 = arith.constant 0 : index
    %80 = vector.load %arg5[%c0_36, %c0_37] : memref<8x128xf32, #tpu.memory_space<vmem>>, vector<8x128xf32>
    tpu.vector_store %arg5[%c0_36, %c0_37], %79 {strides = array<i32>} : memref<8x128xf32, #tpu.memory_space<vmem>>, vector<8x128xf32>,
    %81 = vector.extract_strided_slice %6 {offsets = [0, 1536], sizes = [8, 512], strides = [1, 1]} : vector<8x2048xf32> to vector<8x512xf32>
    %82 = vector.broadcast %7 : vector<8x1xf32> to vector<8x512xf32>
    %83 = arith.addf %81, %82 : vector<8x512xf32>
    %c0_38 = arith.constant 0 : index
    %c0_39 = arith.constant 0 : index
    %84 = vector.load %arg6[%c0_38, %c0_39] : memref<8x512xf32, #tpu.memory_space<vmem>>, vector<8x512xf32>
    %85 = vector.broadcast %8 : f32 to vector<8x512xf32>
    %86 = arith.mulf %84, %85 : vector<8x512xf32>
    %87 = arith.addf %86, %83 : vector<8x512xf32>
    %cst_40 = arith.constant 1.000000e+00 : f32
    %88 = vector.broadcast %cst_40 : f32 to vector<8x512xf32>
    %89 = arith.cmpf oge, %87, %88 : vector<8x512xf32>
    %90 = arith.extui %89 : vector<8x512xi1> to vector<8x512xi32>
    %91 = arith.sitofp %90 : vector<8x512xi32> to vector<8x512xf32>
    %cst_41 = arith.constant 0.000000e+00 : f32
    %92 = vector.broadcast %cst_41 : f32 to vector<8x512xf32>
    %93 = arith.select %89, %92, %87 : vector<8x512xi1>, vector<8x512xf32>
    %c0_42 = arith.constant 0 : index
    %c0_43 = arith.constant 0 : index
    %94 = vector.load %arg6[%c0_42, %c0_43] : memref<8x512xf32, #tpu.memory_space<vmem>>, vector<8x512xf32>
    tpu.vector_store %arg6[%c0_42, %c0_43], %93 {strides = array<i32>} : memref<8x512xf32, #tpu.memory_space<vmem>>, vector<8x512xf32>,
    %95 = vector.extract_strided_slice %91 {offsets = [0, 0], sizes = [8, 128], strides = [1, 1]} : vector<8x512xf32> to vector<8x128xf32>
    %96 = vector.extract_strided_slice %91 {offsets = [0, 128], sizes = [8, 128], strides = [1, 1]} : vector<8x512xf32> to vector<8x128xf32>
    %97 = arith.maximumf %95, %96 : vector<8x128xf32>
    %98 = vector.extract_strided_slice %91 {offsets = [0, 256], sizes = [8, 128], strides = [1, 1]} : vector<8x512xf32> to vector<8x128xf32>
    %99 = vector.extract_strided_slice %91 {offsets = [0, 384], sizes = [8, 128], strides = [1, 1]} : vector<8x512xf32> to vector<8x128xf32>
    %100 = arith.maximumf %98, %99 : vector<8x128xf32>
    %101 = arith.maximumf %97, %100 : vector<8x128xf32>
    %c0_44 = arith.constant 0 : index
    %c0_45 = arith.constant 0 : index
    %102 = vector.load %arg5[%c0_44, %c0_45] : memref<8x128xf32, #tpu.memory_space<vmem>>, vector<8x128xf32>
    %103 = arith.addf %102, %101 : vector<8x128xf32>
    %c0_46 = arith.constant 0 : index
    %c0_47 = arith.constant 0 : index
    %104 = vector.load %arg5[%c0_46, %c0_47] : memref<8x128xf32, #tpu.memory_space<vmem>>, vector<8x128xf32>
    tpu.vector_store %arg5[%c0_46, %c0_47], %103 {strides = array<i32>} : memref<8x128xf32, #tpu.memory_space<vmem>>, vector<8x128xf32>,
    return
  }
  func.func @transform_0(%arg0: i32) -> (i32, i32, i32) {
    %c0_i32 = arith.constant 0 : i32
    %c0_i32_0 = arith.constant 0 : i32
    %c0_i32_1 = arith.constant 0 : i32
    return %arg0, %c0_i32, %c0_i32_0 : i32, i32, i32
  }
  func.func @transform_1(%arg0: i32) -> (i32, i32) {
    %c0_i32 = arith.constant 0 : i32
    %c0_i32_0 = arith.constant 0 : i32
    %c0_i32_1 = arith.constant 0 : i32
    return %c0_i32, %c0_i32_0 : i32, i32
  }
  func.func @transform_2(%arg0: i32) -> (i32, i32) {
    %c0_i32 = arith.constant 0 : i32
    %c0_i32_0 = arith.constant 0 : i32
    %c0_i32_1 = arith.constant 0 : i32
    return %c0_i32, %c0_i32_0 : i32, i32
  }
  func.func @transform_3(%arg0: i32) -> i32 {
    %c0_i32 = arith.constant 0 : i32
    %c0_i32_0 = arith.constant 0 : i32
    return %c0_i32 : i32
  }
  func.func @transform_4(%arg0: i32) -> (i32, i32) {
    %c0_i32 = arith.constant 0 : i32
    %c0_i32_0 = arith.constant 0 : i32
    %c0_i32_1 = arith.constant 0 : i32
    return %c0_i32, %c0_i32_0 : i32, i32
  }
}

</mosaic_0001>

<llo_original>
// kernel: resnetn_forward.1
$region0: #{resnetn_forward.1}
  #allocation0 [shape = 'u32[]', space=smem, size = 0x4, offset = 0x4, fixed_abs, tag = 'smem constant byte address 0x4 - core index']
  #allocation1 [shape = 'u32[144,128]{1,0:T(1,128)}', space=vmem, size = 0x12000, scoped, tag = 'internal scratch']
  #allocation2 [shape = 'f32[8,512]{1,0:T(8,128)}', space=vmem, size = 0x4000, scoped, tag = 'scratch operand']
  #allocation3 [shape = 'f32[1]{0:T(128)S(6)}', space=smem, size = 0x200, scoped, tag = 'scoped memory for resnetn_forward.1']
  %s0 = inlined_call_operand.vmem [shape: bf16[1,18,2048], index: 0, kind: input, shape index: {}]
  %s1 = inlined_call_operand.vmem [shape: bf16[8,18], index: 1, kind: input, shape index: {}]
  %s2 = inlined_call_operand.vmem [shape: f32[8,1], index: 2, kind: input, shape index: {}]
  %s3 = inlined_call_operand.<no memory space> [shape: f32[1], index: 3, kind: input, shape index: {}]
  %s4 = inlined_call_operand.vmem [shape: f32[8,128], index: 4, kind: output, shape index: {}]
  %s5 = sld [smem:[#allocation0]]
  $region30: #{resnetn_forward.1} parent=0
    _
  %s7 = ssub.s32 1, %s5
  %s8 = scalar_select 0, %s7, %s5
  %9 = sst [smem:[#allocation3]] %s3
  // Predicated region
  $region2: #{resnetn_forward.1} parent=0 // pred_check
    _
  $region3: #{resnetn_forward.1} parent=0 // pred_check_branch
    %11 = sbr.rel (0) target = $region5
  $region4: #{resnetn_forward.1} parent=0 // pred_region
    _
  $region5: #{resnetn_forward.1} parent=0 // pred_fallthru
    _
  // Predicated region
  $region6: #{resnetn_forward.1} parent=0 // pred_check
    _
  $region7: #{resnetn_forward.1} parent=0 // pred_check_branch
    %13 = sbr.rel (0) target = $region9
  $region8: #{resnetn_forward.1} parent=0 // pred_region
    _
  $region9: #{resnetn_forward.1} parent=0 // pred_fallthru
    _
  // Predicated region
  $region10: #{resnetn_forward.1} parent=0 // pred_check
    _
  $region11: #{resnetn_forward.1} parent=0 // pred_check_branch
    %15 = sbr.rel (0) target = $region13
  $region12: #{resnetn_forward.1} parent=0 // pred_region
    _
  $region13: #{resnetn_forward.1} parent=0 // pred_fallthru
    _
  // Predicated region
  $region14: #{resnetn_forward.1} parent=0 // pred_check
    _
  $region15: #{resnetn_forward.1} parent=0 // pred_check_branch
    %17 = sbr.rel (0) target = $region17
  $region16: #{resnetn_forward.1} parent=0 // pred_region
    _
  $region17: #{resnetn_forward.1} parent=0 // pred_fallthru
    _
  %p19 = scmp.eq.s32.totalorder 0, 0
  // Predicated region
  $region18: #{resnetn_forward.1} parent=0 // pred_check
    %p20 = pneg %p19
  $region19: #{resnetn_forward.1} parent=0 // pred_check_branch
    %22 = sbr.rel (%p20) target = $region21
  $region20: #{resnetn_forward.1} parent=0 // pred_region
    %23 = vst [vmem:[#allocation2] sm:$0xff] 0.0
    %24 = vst [vmem:[#allocation2 + $0x8] sm:$0xff] 0.0
    %25 = vst [vmem:[#allocation2 + $0x10] sm:$0xff] 0.0
    %26 = vst [vmem:[#allocation2 + $0x18] sm:$0xff] 0.0
    %27 = vst [vmem:[%s4] sm:$0xff] 0.0
  $region21: #{resnetn_forward.1} parent=0 // pred_fallthru
    _
  %v28 = vld [vmem:[%s1] sm:$0xf]
  %v29 = vld [vmem:[%s0] sm:$0xff]
  %v30 = vld [vmem:[%s0 + $0x8] sm:$0xff]
  %v31 = vld [vmem:[%s0 + $0x10] sm:$0xff]
  %v32 = vld [vmem:[%s0 + $0x18] sm:$0xff]
  %v33 = vld [vmem:[%s0 + $0x20] sm:$0xff]
  %v34 = vld [vmem:[%s0 + $0x28] sm:$0xff]
  %v35 = vld [vmem:[%s0 + $0x30] sm:$0xff]
  %v36 = vld [vmem:[%s0 + $0x38] sm:$0xff]
  %v37 = vld [vmem:[%s0 + $0x40] sm:$0xff]
  %v38 = vld [vmem:[%s0 + $0x48] sm:$0xff]
  %v39 = vld [vmem:[%s0 + $0x50] sm:$0xff]
  %v40 = vld [vmem:[%s0 + $0x58] sm:$0xff]
  %v41 = vld [vmem:[%s0 + $0x60] sm:$0xff]
  %v42 = vld [vmem:[%s0 + $0x68] sm:$0xff]
  %v43 = vld [vmem:[%s0 + $0x70] sm:$0xff]
  %v44 = vld [vmem:[%s0 + $0x78] sm:$0xff]
  %v45 = vld [vmem:[%s0 + $0x80] sm:$0x11]
  %v46 = vld [vmem:[%s0 + $0x88] sm:$0x11]
  %v47 = vld [vmem:[%s0 + $0x90] sm:$0x11]
  %v48 = vld [vmem:[%s0 + $0x98] sm:$0x11]
  %v49 = vld [vmem:[%s0 + $0xa0] sm:$0x11]
  %v50 = vld [vmem:[%s0 + $0xa8] sm:$0x11]
  %v51 = vld [vmem:[%s0 + $0xb0] sm:$0x11]
  %v52 = vld [vmem:[%s0 + $0xb8] sm:$0x11]
  %v77 = vunpack.c.l.b16 %v29
  %v78 = vunpack.c.h.b16 %v29
  %v79 = vunpack.c.l.b16 %v30
  %v80 = vunpack.c.h.b16 %v30
  %v81 = vunpack.c.l.b16 %v31
  %v82 = vunpack.c.h.b16 %v31
  %v83 = vunpack.c.l.b16 %v32
  %v84 = vunpack.c.h.b16 %v32
  %v85 = vunpack.c.l.b16 %v33
  %v86 = vunpack.c.h.b16 %v33
  %v87 = vunpack.c.l.b16 %v34
  %v88 = vunpack.c.h.b16 %v34
  %v89 = vunpack.c.l.b16 %v35
  %v90 = vunpack.c.h.b16 %v35
  %v91 = vunpack.c.l.b16 %v36
  %v92 = vunpack.c.h.b16 %v36
  %v93 = vunpack.c.l.b16 %v37
  %v94 = vunpack.c.h.b16 %v37
  %v95 = vunpack.c.l.b16 %v38
  %v96 = vunpack.c.h.b16 %v38
  %v97 = vunpack.c.l.b16 %v39
  %v98 = vunpack.c.h.b16 %v39
  %v99 = vunpack.c.l.b16 %v40
  %v100 = vunpack.c.h.b16 %v40
  %v101 = vunpack.c.l.b16 %v41
  %v102 = vunpack.c.h.b16 %v41
  %v103 = vunpack.c.l.b16 %v42
  %v104 = vunpack.c.h.b16 %v42
  %v105 = vunpack.c.l.b16 %v43
  %v106 = vunpack.c.h.b16 %v43
  %v107 = vunpack.c.l.b16 %v44
  %v108 = vunpack.c.h.b16 %v44
  %v109 = vunpack.c.l.b16 %v45
  %v110 = vunpack.c.h.b16 %v45
  %v111 = vunpack.c.l.b16 %v46
  %v112 = vunpack.c.h.b16 %v46
  %v113 = vunpack.c.l.b16 %v47
  %v114 = vunpack.c.h.b16 %v47
  %v115 = vunpack.c.l.b16 %v48
  %v116 = vunpack.c.h.b16 %v48
  %v117 = vunpack.c.l.b16 %v49
  %v118 = vunpack.c.h.b16 %v49
  %v119 = vunpack.c.l.b16 %v50
  %v120 = vunpack.c.h.b16 %v50
  %v121 = vunpack.c.l.b16 %v51
  %v122 = vunpack.c.h.b16 %v51
  %v123 = vunpack.c.l.b16 %v52
  %v124 = vunpack.c.h.b16 %v52
  %v125 = vpack.c.b16 %v93, %v77
  %v126 = vpack.c.b16 %v94, %v78
  %v127 = vpack.c.b16 %v95, %v79
  %v128 = vpack.c.b16 %v96, %v80
  %v129 = vpack.c.b16 %v97, %v81
  %v130 = vpack.c.b16 %v98, %v82
  %v131 = vpack.c.b16 %v99, %v83
  %v132 = vpack.c.b16 %v100, %v84
  %v133 = vpack.c.b16 %v101, %v85
  %v134 = vpack.c.b16 %v102, %v86
  %v135 = vpack.c.b16 %v103, %v87
  %v136 = vpack.c.b16 %v104, %v88
  %v137 = vpack.c.b16 %v105, %v89
  %v138 = vpack.c.b16 %v106, %v90
  %v139 = vpack.c.b16 %v107, %v91
  %v140 = vpack.c.b16 %v108, %v92
  %v141 = vpack.c.b16 %v109, %v109
  %v142 = vpack.c.b16 %v110, %v110
  %v143 = vpack.c.b16 %v111, %v111
  %v144 = vpack.c.b16 %v112, %v112
  %v145 = vpack.c.b16 %v113, %v113
  %v146 = vpack.c.b16 %v114, %v114
  %v147 = vpack.c.b16 %v115, %v115
  %v148 = vpack.c.b16 %v116, %v116
  %v149 = vpack.c.b16 %v117, %v117
  %v150 = vpack.c.b16 %v118, %v118
  %v151 = vpack.c.b16 %v119, %v119
  %v152 = vpack.c.b16 %v120, %v120
  %v153 = vpack.c.b16 %v121, %v121
  %v154 = vpack.c.b16 %v122, %v122
  %v155 = vpack.c.b16 %v123, %v123
  %v156 = vpack.c.b16 %v124, %v124
  %vm173 = vcmask 146432
  %v175 = vsel %vm173, %v28, 0
  %vm177 = vcmask 1040384
  %v179 = vsel %vm177, %v141, 0
  %v182 = vsel %vm177, %v142, 0
  %v185 = vsel %vm177, %v143, 0
  %v188 = vsel %vm177, %v144, 0
  %v191 = vsel %vm177, %v145, 0
  %v194 = vsel %vm177, %v146, 0
  %v197 = vsel %vm177, %v147, 0
  %v200 = vsel %vm177, %v148, 0
  %v203 = vsel %vm177, %v149, 0
  %v206 = vsel %vm177, %v150, 0
  %v209 = vsel %vm177, %v151, 0
  %v212 = vsel %vm177, %v152, 0
  %v215 = vsel %vm177, %v153, 0
  %v218 = vsel %vm177, %v154, 0
  %v221 = vsel %vm177, %v155, 0
  %v224 = vsel %vm177, %v156, 0
  %226 = vmatprep.subr.bf16.mxu0 0
  %227 = vmatpush1.bf16.msra.mxu0 0
  %228 = vmatprep.subr.bf16.mxu0 0
  %229 = vmatpush1.bf16.msra.mxu0 0
  %230 = vmatprep.subr.bf16.mxu0 0
  %231 = vmatpush1.bf16.msra.mxu0 0
  %232 = vmatprep.subr.bf16.mxu0 0
  %233 = vmatpush1.bf16.msra.mxu0 0
  %234 = vmatprep.subr.bf16.mxu0 0
  %235 = vmatpush1.bf16.msra.mxu0 0
  %236 = vmatprep.subr.bf16.mxu0 0
  %237 = vmatpush1.bf16.msra.mxu0 0
  %238 = vmatprep.subr.bf16.mxu0 %v182
  %239 = vmatpush1.bf16.msra.mxu0 %v179
  %240 = vmatprep.subr.bf16.mxu0 %v126
  %241 = vmatpush1.bf16.msra.mxu0 %v125
  %242 = vmatprep.subr.bf16.mxu0 0
  %243 = vmatpush2.bf16.msra.mxu0 0
  %244 = vmatprep.subr.bf16.mxu0 0
  %245 = vmatpush2.bf16.msra.mxu0 0
  %246 = vmatprep.subr.bf16.mxu0 0
  %247 = vmatpush2.bf16.msra.mxu0 0
  %248 = vmatprep.subr.bf16.mxu0 0
  %249 = vmatpush2.bf16.msra.mxu0 0
  %250 = vmatprep.subr.bf16.mxu0 0
  %251 = vmatpush2.bf16.msra.mxu0 0
  %252 = vmatprep.subr.bf16.mxu0 0
  %253 = vmatpush2.bf16.msra.mxu0 0
  %254 = vmatprep.subr.bf16.mxu0 0
  %255 = vmatpush2.bf16.msra.mxu0 0
  %256 = vmatprep.subr.bf16.mxu0 0
  %257 = vmatpush2.bf16.msra.mxu0 0
  %258 = vmatprep.mubr.bf16.mxu0 0
  %259 = vmatmul.mubr.bf16.gmra.mxu0 %v175
  %v260 = vpop.f32.mrf.mxu0
  %v261 = vadd.f32 0.0, %v260
  %v262 = vpop.f32.mrf.mxu0
  %v263 = vadd.f32 0.0, %v262
  %v264 = vpop.f32.mrf.mxu0
  %v265 = vpop.f32.mrf.mxu0
  %266 = vdwg.mxu0
  %267 = vmatprep.subr.bf16.mxu0 0
  %268 = vmatpush1.bf16.msra.mxu0 0
  %269 = vmatprep.subr.bf16.mxu0 0
  %270 = vmatpush1.bf16.msra.mxu0 0
  %271 = vmatprep.subr.bf16.mxu0 0
  %272 = vmatpush1.bf16.msra.mxu0 0
  %273 = vmatprep.subr.bf16.mxu0 0
  %274 = vmatpush1.bf16.msra.mxu0 0
  %275 = vmatprep.subr.bf16.mxu0 0
  %276 = vmatpush1.bf16.msra.mxu0 0
  %277 = vmatprep.subr.bf16.mxu0 0
  %278 = vmatpush1.bf16.msra.mxu0 0
  %279 = vmatprep.subr.bf16.mxu0 %v188
  %280 = vmatpush1.bf16.msra.mxu0 %v185
  %281 = vmatprep.subr.bf16.mxu0 %v128
  %282 = vmatpush1.bf16.msra.mxu0 %v127
  %283 = vmatprep.subr.bf16.mxu0 0
  %284 = vmatpush2.bf16.msra.mxu0 0
  %285 = vmatprep.subr.bf16.mxu0 0
  %286 = vmatpush2.bf16.msra.mxu0 0
  %287 = vmatprep.subr.bf16.mxu0 0
  %288 = vmatpush2.bf16.msra.mxu0 0
  %289 = vmatprep.subr.bf16.mxu0 0
  %290 = vmatpush2.bf16.msra.mxu0 0
  %291 = vmatprep.subr.bf16.mxu0 0
  %292 = vmatpush2.bf16.msra.mxu0 0
  %293 = vmatprep.subr.bf16.mxu0 0
  %294 = vmatpush2.bf16.msra.mxu0 0
  %295 = vmatprep.subr.bf16.mxu0 0
  %296 = vmatpush2.bf16.msra.mxu0 0
  %297 = vmatprep.subr.bf16.mxu0 0
  %298 = vmatpush2.bf16.msra.mxu0 0
  %299 = vmatprep.mubr.bf16.mxu0 0
  %300 = vmatmul.mubr.bf16.gmra.mxu0 %v175
  %v301 = vpop.f32.mrf.mxu0
  %v302 = vadd.f32 0.0, %v301
  %v303 = vpop.f32.mrf.mxu0
  %v304 = vadd.f32 0.0, %v303
  %v305 = vpop.f32.mrf.mxu0
  %v306 = vpop.f32.mrf.mxu0
  %307 = vdwg.mxu0
  %308 = vmatprep.subr.bf16.mxu0 0
  %309 = vmatpush1.bf16.msra.mxu0 0
  %310 = vmatprep.subr.bf16.mxu0 0
  %311 = vmatpush1.bf16.msra.mxu0 0
  %312 = vmatprep.subr.bf16.mxu0 0
  %313 = vmatpush1.bf16.msra.mxu0 0
  %314 = vmatprep.subr.bf16.mxu0 0
  %315 = vmatpush1.bf16.msra.mxu0 0
  %316 = vmatprep.subr.bf16.mxu0 0
  %317 = vmatpush1.bf16.msra.mxu0 0
  %318 = vmatprep.subr.bf16.mxu0 0
  %319 = vmatpush1.bf16.msra.mxu0 0
  %320 = vmatprep.subr.bf16.mxu0 %v194
  %321 = vmatpush1.bf16.msra.mxu0 %v191
  %322 = vmatprep.subr.bf16.mxu0 %v130
  %323 = vmatpush1.bf16.msra.mxu0 %v129
  %324 = vmatprep.subr.bf16.mxu0 0
  %325 = vmatpush2.bf16.msra.mxu0 0
  %326 = vmatprep.subr.bf16.mxu0 0
  %327 = vmatpush2.bf16.msra.mxu0 0
  %328 = vmatprep.subr.bf16.mxu0 0
  %329 = vmatpush2.bf16.msra.mxu0 0
  %330 = vmatprep.subr.bf16.mxu0 0
  %331 = vmatpush2.bf16.msra.mxu0 0
  %332 = vmatprep.subr.bf16.mxu0 0
  %333 = vmatpush2.bf16.msra.mxu0 0
  %334 = vmatprep.subr.bf16.mxu0 0
  %335 = vmatpush2.bf16.msra.mxu0 0
  %336 = vmatprep.subr.bf16.mxu0 0
  %337 = vmatpush2.bf16.msra.mxu0 0
  %338 = vmatprep.subr.bf16.mxu0 0
  %339 = vmatpush2.bf16.msra.mxu0 0
  %340 = vmatprep.mubr.bf16.mxu0 0
  %341 = vmatmul.mubr.bf16.gmra.mxu0 %v175
  %v342 = vpop.f32.mrf.mxu0
  %v343 = vadd.f32 0.0, %v342
  %v344 = vpop.f32.mrf.mxu0
  %v345 = vadd.f32 0.0, %v344
  %v346 = vpop.f32.mrf.mxu0
  %v347 = vpop.f32.mrf.mxu0
  %348 = vdwg.mxu0
  %349 = vmatprep.subr.bf16.mxu0 0
  %350 = vmatpush1.bf16.msra.mxu0 0
  %351 = vmatprep.subr.bf16.mxu0 0
  %352 = vmatpush1.bf16.msra.mxu0 0
  %353 = vmatprep.subr.bf16.mxu0 0
  %354 = vmatpush1.bf16.msra.mxu0 0
  %355 = vmatprep.subr.bf16.mxu0 0
  %356 = vmatpush1.bf16.msra.mxu0 0
  %357 = vmatprep.subr.bf16.mxu0 0
  %358 = vmatpush1.bf16.msra.mxu0 0
  %359 = vmatprep.subr.bf16.mxu0 0
  %360 = vmatpush1.bf16.msra.mxu0 0
  %361 = vmatprep.subr.bf16.mxu0 %v200
  %362 = vmatpush1.bf16.msra.mxu0 %v197
  %363 = vmatprep.subr.bf16.mxu0 %v132
  %364 = vmatpush1.bf16.msra.mxu0 %v131
  %365 = vmatprep.subr.bf16.mxu0 0
  %366 = vmatpush2.bf16.msra.mxu0 0
  %367 = vmatprep.subr.bf16.mxu0 0
  %368 = vmatpush2.bf16.msra.mxu0 0
  %369 = vmatprep.subr.bf16.mxu0 0
  %370 = vmatpush2.bf16.msra.mxu0 0
  %371 = vmatprep.subr.bf16.mxu0 0
  %372 = vmatpush2.bf16.msra.mxu0 0
  %373 = vmatprep.subr.bf16.mxu0 0
  %374 = vmatpush2.bf16.msra.mxu0 0
  %375 = vmatprep.subr.bf16.mxu0 0
  %376 = vmatpush2.bf16.msra.mxu0 0
  %377 = vmatprep.subr.bf16.mxu0 0
  %378 = vmatpush2.bf16.msra.mxu0 0
  %379 = vmatprep.subr.bf16.mxu0 0
  %380 = vmatpush2.bf16.msra.mxu0 0
  %381 = vmatprep.mubr.bf16.mxu0 0
  %382 = vmatmul.mubr.bf16.gmra.mxu0 %v175
  %v383 = vpop.f32.mrf.mxu0
  %v384 = vadd.f32 0.0, %v383
  %v385 = vpop.f32.mrf.mxu0
  %v386 = vadd.f32 0.0, %v385
  %v387 = vpop.f32.mrf.mxu0
  %v388 = vpop.f32.mrf.mxu0
  %389 = vdwg.mxu0
  %390 = vmatprep.subr.bf16.mxu0 0
  %391 = vmatpush1.bf16.msra.mxu0 0
  %392 = vmatprep.subr.bf16.mxu0 0
  %393 = vmatpush1.bf16.msra.mxu0 0
  %394 = vmatprep.subr.bf16.mxu0 0
  %395 = vmatpush1.bf16.msra.mxu0 0
  %396 = vmatprep.subr.bf16.mxu0 0
  %397 = vmatpush1.bf16.msra.mxu0 0
  %398 = vmatprep.subr.bf16.mxu0 0
  %399 = vmatpush1.bf16.msra.mxu0 0
  %400 = vmatprep.subr.bf16.mxu0 0
  %401 = vmatpush1.bf16.msra.mxu0 0
  %402 = vmatprep.subr.bf16.mxu0 %v206
  %403 = vmatpush1.bf16.msra.mxu0 %v203
  %404 = vmatprep.subr.bf16.mxu0 %v134
  %405 = vmatpush1.bf16.msra.mxu0 %v133
  %406 = vmatprep.subr.bf16.mxu0 0
  %407 = vmatpush2.bf16.msra.mxu0 0
  %408 = vmatprep.subr.bf16.mxu0 0
  %409 = vmatpush2.bf16.msra.mxu0 0
  %410 = vmatprep.subr.bf16.mxu0 0
  %411 = vmatpush2.bf16.msra.mxu0 0
  %412 = vmatprep.subr.bf16.mxu0 0
  %413 = vmatpush2.bf16.msra.mxu0 0
  %414 = vmatprep.subr.bf16.mxu0 0
  %415 = vmatpush2.bf16.msra.mxu0 0
  %416 = vmatprep.subr.bf16.mxu0 0
  %417 = vmatpush2.bf16.msra.mxu0 0
  %418 = vmatprep.subr.bf16.mxu0 0
  %419 = vmatpush2.bf16.msra.mxu0 0
  %420 = vmatprep.subr.bf16.mxu0 0
  %421 = vmatpush2.bf16.msra.mxu0 0
  %422 = vmatprep.mubr.bf16.mxu0 0
  %423 = vmatmul.mubr.bf16.gmra.mxu0 %v175
  %v424 = vpop.f32.mrf.mxu0
  %v425 = vadd.f32 0.0, %v424
  %v426 = vpop.f32.mrf.mxu0
  %v427 = vadd.f32 0.0, %v426
  %v428 = vpop.f32.mrf.mxu0
  %v429 = vpop.f32.mrf.mxu0
  %430 = vdwg.mxu0
  %431 = vmatprep.subr.bf16.mxu0 0
  %432 = vmatpush1.bf16.msra.mxu0 0
  %433 = vmatprep.subr.bf16.mxu0 0
  %434 = vmatpush1.bf16.msra.mxu0 0
  %435 = vmatprep.subr.bf16.mxu0 0
  %436 = vmatpush1.bf16.msra.mxu0 0
  %437 = vmatprep.subr.bf16.mxu0 0
  %438 = vmatpush1.bf16.msra.mxu0 0
  %439 = vmatprep.subr.bf16.mxu0 0
  %440 = vmatpush1.bf16.msra.mxu0 0
  %441 = vmatprep.subr.bf16.mxu0 0
  %442 = vmatpush1.bf16.msra.mxu0 0
  %443 = vmatprep.subr.bf16.mxu0 %v212
  %444 = vmatpush1.bf16.msra.mxu0 %v209
  %445 = vmatprep.subr.bf16.mxu0 %v136
  %446 = vmatpush1.bf16.msra.mxu0 %v135
  %447 = vmatprep.subr.bf16.mxu0 0
  %448 = vmatpush2.bf16.msra.mxu0 0
  %449 = vmatprep.subr.bf16.mxu0 0
  %450 = vmatpush2.bf16.msra.mxu0 0
  %451 = vmatprep.subr.bf16.mxu0 0
  %452 = vmatpush2.bf16.msra.mxu0 0
  %453 = vmatprep.subr.bf16.mxu0 0
  %454 = vmatpush2.bf16.msra.mxu0 0
  %455 = vmatprep.subr.bf16.mxu0 0
  %456 = vmatpush2.bf16.msra.mxu0 0
  %457 = vmatprep.subr.bf16.mxu0 0
  %458 = vmatpush2.bf16.msra.mxu0 0
  %459 = vmatprep.subr.bf16.mxu0 0
  %460 = vmatpush2.bf16.msra.mxu0 0
  %461 = vmatprep.subr.bf16.mxu0 0
  %462 = vmatpush2.bf16.msra.mxu0 0
  %463 = vmatprep.mubr.bf16.mxu0 0
  %464 = vmatmul.mubr.bf16.gmra.mxu0 %v175
  %v465 = vpop.f32.mrf.mxu0
  %v466 = vadd.f32 0.0, %v465
  %v467 = vpop.f32.mrf.mxu0
  %v468 = vadd.f32 0.0, %v467
  %v469 = vpop.f32.mrf.mxu0
  %v470 = vpop.f32.mrf.mxu0
  %471 = vdwg.mxu0
  %472 = vmatprep.subr.bf16.mxu0 0
  %473 = vmatpush1.bf16.msra.mxu0 0
  %474 = vmatprep.subr.bf16.mxu0 0
  %475 = vmatpush1.bf16.msra.mxu0 0
  %476 = vmatprep.subr.bf16.mxu0 0
  %477 = vmatpush1.bf16.msra.mxu0 0
  %478 = vmatprep.subr.bf16.mxu0 0
  %479 = vmatpush1.bf16.msra.mxu0 0
  %480 = vmatprep.subr.bf16.mxu0 0
  %481 = vmatpush1.bf16.msra.mxu0 0
  %482 = vmatprep.subr.bf16.mxu0 0
  %483 = vmatpush1.bf16.msra.mxu0 0
  %484 = vmatprep.subr.bf16.mxu0 %v218
  %485 = vmatpush1.bf16.msra.mxu0 %v215
  %486 = vmatprep.subr.bf16.mxu0 %v138
  %487 = vmatpush1.bf16.msra.mxu0 %v137
  %488 = vmatprep.subr.bf16.mxu0 0
  %489 = vmatpush2.bf16.msra.mxu0 0
  %490 = vmatprep.subr.bf16.mxu0 0
  %491 = vmatpush2.bf16.msra.mxu0 0
  %492 = vmatprep.subr.bf16.mxu0 0
  %493 = vmatpush2.bf16.msra.mxu0 0
  %494 = vmatprep.subr.bf16.mxu0 0
  %495 = vmatpush2.bf16.msra.mxu0 0
  %496 = vmatprep.subr.bf16.mxu0 0
  %497 = vmatpush2.bf16.msra.mxu0 0
  %498 = vmatprep.subr.bf16.mxu0 0
  %499 = vmatpush2.bf16.msra.mxu0 0
  %500 = vmatprep.subr.bf16.mxu0 0
  %501 = vmatpush2.bf16.msra.mxu0 0
  %502 = vmatprep.subr.bf16.mxu0 0
  %503 = vmatpush2.bf16.msra.mxu0 0
  %504 = vmatprep.mubr.bf16.mxu0 0
  %505 = vmatmul.mubr.bf16.gmra.mxu0 %v175
  %v506 = vpop.f32.mrf.mxu0
  %v507 = vadd.f32 0.0, %v506
  %v508 = vpop.f32.mrf.mxu0
  %v509 = vadd.f32 0.0, %v508
  %v510 = vpop.f32.mrf.mxu0
  %v511 = vpop.f32.mrf.mxu0
  %512 = vdwg.mxu0
  %513 = vmatprep.subr.bf16.mxu0 0
  %514 = vmatpush1.bf16.msra.mxu0 0
  %515 = vmatprep.subr.bf16.mxu0 0
  %516 = vmatpush1.bf16.msra.mxu0 0
  %517 = vmatprep.subr.bf16.mxu0 0
  %518 = vmatpush1.bf16.msra.mxu0 0
  %519 = vmatprep.subr.bf16.mxu0 0
  %520 = vmatpush1.bf16.msra.mxu0 0
  %521 = vmatprep.subr.bf16.mxu0 0
  %522 = vmatpush1.bf16.msra.mxu0 0
  %523 = vmatprep.subr.bf16.mxu0 0
  %524 = vmatpush1.bf16.msra.mxu0 0
  %525 = vmatprep.subr.bf16.mxu0 %v224
  %526 = vmatpush1.bf16.msra.mxu0 %v221
  %527 = vmatprep.subr.bf16.mxu0 %v140
  %528 = vmatpush1.bf16.msra.mxu0 %v139
  %529 = vmatprep.subr.bf16.mxu0 0
  %530 = vmatpush2.bf16.msra.mxu0 0
  %531 = vmatprep.subr.bf16.mxu0 0
  %532 = vmatpush2.bf16.msra.mxu0 0
  %533 = vmatprep.subr.bf16.mxu0 0
  %534 = vmatpush2.bf16.msra.mxu0 0
  %535 = vmatprep.subr.bf16.mxu0 0
  %536 = vmatpush2.bf16.msra.mxu0 0
  %537 = vmatprep.subr.bf16.mxu0 0
  %538 = vmatpush2.bf16.msra.mxu0 0
  %539 = vmatprep.subr.bf16.mxu0 0
  %540 = vmatpush2.bf16.msra.mxu0 0
  %541 = vmatprep.subr.bf16.mxu0 0
  %542 = vmatpush2.bf16.msra.mxu0 0
  %543 = vmatprep.subr.bf16.mxu0 0
  %544 = vmatpush2.bf16.msra.mxu0 0
  %545 = vmatprep.mubr.bf16.mxu0 0
  %546 = vmatmul.mubr.bf16.gmra.mxu0 %v175
  %v547 = vpop.f32.mrf.mxu0
  %v548 = vadd.f32 0.0, %v547
  %v549 = vpop.f32.mrf.mxu0
  %v550 = vadd.f32 0.0, %v549
  %v551 = vpop.f32.mrf.mxu0
  %v552 = vpop.f32.mrf.mxu0
  %553 = vdwg.mxu0
  %v554 = vld [vmem:[%s2] sm:$0xff]
  %s555 = sld [smem:[#allocation3]]
  %557 = vset.pattern.permute.xlu0 0
  %558 = vperm.xlu0 %557, %v554
  %v559 = vpop.permute.xlu0 %558
  %v561 = vadd.f32 %v261, %v559
  %v562 = vadd.f32 %v263, %v559
  %v563 = vadd.f32 %v302, %v559
  %v564 = vadd.f32 %v304, %v559
  %v565 = vld [vmem:[#allocation2] sm:$0xff]
  %v566 = vld [vmem:[#allocation2 + $0x8] sm:$0xff]
  %v567 = vld [vmem:[#allocation2 + $0x10] sm:$0xff]
  %v568 = vld [vmem:[#allocation2 + $0x18] sm:$0xff]
  %v569 = vstv %s555
  %v570 = vmul.f32 %v565, %v569
  %v571 = vmul.f32 %v566, %v569
  %v572 = vmul.f32 %v567, %v569
  %v573 = vmul.f32 %v568, %v569
  %v574 = vadd.f32 %v570, %v561
  %v575 = vadd.f32 %v571, %v562
  %v576 = vadd.f32 %v572, %v563
  %v577 = vadd.f32 %v573, %v564
  %vm578 = vcmp.ge.f32.partialorder %v574, 1.0
  %vm579 = vcmp.ge.f32.partialorder %v575, 1.0
  %vm580 = vcmp.ge.f32.partialorder %v576, 1.0
  %vm581 = vcmp.ge.f32.partialorder %v577, 1.0
  %v582 = vsel %vm578, 1, 0
  %v583 = vsel %vm579, 1, 0
  %v584 = vsel %vm580, 1, 0
  %v585 = vsel %vm581, 1, 0
  %v586 = vcvt.s32.f32 %v582
  %v587 = vcvt.s32.f32 %v583
  %v588 = vcvt.s32.f32 %v584
  %v589 = vcvt.s32.f32 %v585
  %v590 = vsel %vm578, 0.0, %v574
  %v591 = vsel %vm579, 0.0, %v575
  %v592 = vsel %vm580, 0.0, %v576
  %v593 = vsel %vm581, 0.0, %v577
  %594 = vst [vmem:[#allocation2] sm:$0xff] %v590
  %595 = vst [vmem:[#allocation2 + $0x8] sm:$0xff] %v591
  %596 = vst [vmem:[#allocation2 + $0x10] sm:$0xff] %v592
  %597 = vst [vmem:[#allocation2 + $0x18] sm:$0xff] %v593
  %v598 = vmax.f32 %v586, %v587
  %v599 = vmax.f32 %v588, %v589
  %v600 = vmax.f32 %v598, %v599
  %v601 = vld [vmem:[%s4] sm:$0xff]
  %v602 = vadd.f32 %v601, %v600
  %603 = vst [vmem:[%s4] sm:$0xff] %v602
  %v604 = vadd.f32 %v343, %v559
  %v605 = vadd.f32 %v345, %v559
  %v606 = vadd.f32 %v384, %v559
  %v607 = vadd.f32 %v386, %v559
  %v608 = vld [vmem:[#allocation2] sm:$0xff]
  %v609 = vld [vmem:[#allocation2 + $0x8] sm:$0xff]
  %v610 = vld [vmem:[#allocation2 + $0x10] sm:$0xff]
  %v611 = vld [vmem:[#allocation2 + $0x18] sm:$0xff]
  %v612 = vmul.f32 %v608, %v569
  %v613 = vmul.f32 %v609, %v569
  %v614 = vmul.f32 %v610, %v569
  %v615 = vmul.f32 %v611, %v569
  %v616 = vadd.f32 %v612, %v604
  %v617 = vadd.f32 %v613, %v605
  %v618 = vadd.f32 %v614, %v606
  %v619 = vadd.f32 %v615, %v607
  %vm620 = vcmp.ge.f32.partialorder %v616, 1.0
  %vm621 = vcmp.ge.f32.partialorder %v617, 1.0
  %vm622 = vcmp.ge.f32.partialorder %v618, 1.0
  %vm623 = vcmp.ge.f32.partialorder %v619, 1.0
  %v624 = vsel %vm620, 1, 0
  %v625 = vsel %vm621, 1, 0
  %v626 = vsel %vm622, 1, 0
  %v627 = vsel %vm623, 1, 0
  %v628 = vcvt.s32.f32 %v624
  %v629 = vcvt.s32.f32 %v625
  %v630 = vcvt.s32.f32 %v626
  %v631 = vcvt.s32.f32 %v627
  %v632 = vsel %vm620, 0.0, %v616
  %v633 = vsel %vm621, 0.0, %v617
  %v634 = vsel %vm622, 0.0, %v618
  %v635 = vsel %vm623, 0.0, %v619
  %636 = vst [vmem:[#allocation2] sm:$0xff] %v632
  %637 = vst [vmem:[#allocation2 + $0x8] sm:$0xff] %v633
  %638 = vst [vmem:[#allocation2 + $0x10] sm:$0xff] %v634
  %639 = vst [vmem:[#allocation2 + $0x18] sm:$0xff] %v635
  %v640 = vmax.f32 %v628, %v629
  %v641 = vmax.f32 %v630, %v631
  %v642 = vmax.f32 %v640, %v641
  %v643 = vld [vmem:[%s4] sm:$0xff]
  %v644 = vadd.f32 %v643, %v642
  %645 = vst [vmem:[%s4] sm:$0xff] %v644
  %v646 = vadd.f32 %v425, %v559
  %v647 = vadd.f32 %v427, %v559
  %v648 = vadd.f32 %v466, %v559
  %v649 = vadd.f32 %v468, %v559
  %v650 = vld [vmem:[#allocation2] sm:$0xff]
  %v651 = vld [vmem:[#allocation2 + $0x8] sm:$0xff]
  %v652 = vld [vmem:[#allocation2 + $0x10] sm:$0xff]
  %v653 = vld [vmem:[#allocation2 + $0x18] sm:$0xff]
  %v654 = vmul.f32 %v650, %v569
  %v655 = vmul.f32 %v651, %v569
  %v656 = vmul.f32 %v652, %v569
  %v657 = vmul.f32 %v653, %v569
  %v658 = vadd.f32 %v654, %v646
  %v659 = vadd.f32 %v655, %v647
  %v660 = vadd.f32 %v656, %v648
  %v661 = vadd.f32 %v657, %v649
  %vm662 = vcmp.ge.f32.partialorder %v658, 1.0
  %vm663 = vcmp.ge.f32.partialorder %v659, 1.0
  %vm664 = vcmp.ge.f32.partialorder %v660, 1.0
  %vm665 = vcmp.ge.f32.partialorder %v661, 1.0
  %v666 = vsel %vm662, 1, 0
  %v667 = vsel %vm663, 1, 0
  %v668 = vsel %vm664, 1, 0
  %v669 = vsel %vm665, 1, 0
  %v670 = vcvt.s32.f32 %v666
  %v671 = vcvt.s32.f32 %v667
  %v672 = vcvt.s32.f32 %v668
  %v673 = vcvt.s32.f32 %v669
  %v674 = vsel %vm662, 0.0, %v658
  %v675 = vsel %vm663, 0.0, %v659
  %v676 = vsel %vm664, 0.0, %v660
  %v677 = vsel %vm665, 0.0, %v661
  %678 = vst [vmem:[#allocation2] sm:$0xff] %v674
  %679 = vst [vmem:[#allocation2 + $0x8] sm:$0xff] %v675
  %680 = vst [vmem:[#allocation2 + $0x10] sm:$0xff] %v676
  %681 = vst [vmem:[#allocation2 + $0x18] sm:$0xff] %v677
  %v682 = vmax.f32 %v670, %v671
  %v683 = vmax.f32 %v672, %v673
  %v684 = vmax.f32 %v682, %v683
  %v685 = vld [vmem:[%s4] sm:$0xff]
  %v686 = vadd.f32 %v685, %v684
  %687 = vst [vmem:[%s4] sm:$0xff] %v686
  %v688 = vadd.f32 %v507, %v559
  %v689 = vadd.f32 %v509, %v559
  %v690 = vadd.f32 %v548, %v559
  %v691 = vadd.f32 %v550, %v559
  %v692 = vld [vmem:[#allocation2] sm:$0xff]
  %v693 = vld [vmem:[#allocation2 + $0x8] sm:$0xff]
  %v694 = vld [vmem:[#allocation2 + $0x10] sm:$0xff]
  %v695 = vld [vmem:[#allocation2 + $0x18] sm:$0xff]
  %v696 = vmul.f32 %v692, %v569
  %v697 = vmul.f32 %v693, %v569
  %v698 = vmul.f32 %v694, %v569
  %v699 = vmul.f32 %v695, %v569
  %v700 = vadd.f32 %v696, %v688
  %v701 = vadd.f32 %v697, %v689
  %v702 = vadd.f32 %v698, %v690
  %v703 = vadd.f32 %v699, %v691
  %vm704 = vcmp.ge.f32.partialorder %v700, 1.0
  %vm705 = vcmp.ge.f32.partialorder %v701, 1.0
  %vm706 = vcmp.ge.f32.partialorder %v702, 1.0
  %vm707 = vcmp.ge.f32.partialorder %v703, 1.0
  %v708 = vsel %vm704, 1, 0
  %v709 = vsel %vm705, 1, 0
  %v710 = vsel %vm706, 1, 0
  %v711 = vsel %vm707, 1, 0
  %v712 = vcvt.s32.f32 %v708
  %v713 = vcvt.s32.f32 %v709
  %v714 = vcvt.s32.f32 %v710
  %v715 = vcvt.s32.f32 %v711
  %v716 = vsel %vm704, 0.0, %v700
  %v717 = vsel %vm705, 0.0, %v701
  %v718 = vsel %vm706, 0.0, %v702
  %v719 = vsel %vm707, 0.0, %v703
  %720 = vst [vmem:[#allocation2] sm:$0xff] %v716
  %721 = vst [vmem:[#allocation2 + $0x8] sm:$0xff] %v717
  %722 = vst [vmem:[#allocation2 + $0x10] sm:$0xff] %v718
  %723 = vst [vmem:[#allocation2 + $0x18] sm:$0xff] %v719
  %v724 = vmax.f32 %v712, %v713
  %v725 = vmax.f32 %v714, %v715
  %v726 = vmax.f32 %v724, %v725
  %v727 = vld [vmem:[%s4] sm:$0xff]
  %v728 = vadd.f32 %v727, %v726
  %729 = vst [vmem:[%s4] sm:$0xff] %v728
  // Predicated region
  $region22: #{resnetn_forward.1} parent=0 // pred_check
    _
  $region23: #{resnetn_forward.1} parent=0 // pred_check_branch
    %731 = sbr.rel (0) target = $region25
  $region24: #{resnetn_forward.1} parent=0 // pred_region
    _
  $region25: #{resnetn_forward.1} parent=0 // pred_fallthru
    _
  // Predicated region
  $region26: #{resnetn_forward.1} parent=0 // pred_check
    _
  $region27: #{resnetn_forward.1} parent=0 // pred_check_branch
    %733 = sbr.rel (0) target = $region29
  $region28: #{resnetn_forward.1} parent=0 // pred_region
    _
  $region29: #{resnetn_forward.1} parent=0 // pred_fallthru
    _

</llo_original>
